<compile_context>
chip_gen: v7x
topology: tpu7x:2x2x1
jax: 0.10.0
libtpu: 0.0.40
codegen_flags: <defaults>
</compile_context>

<pallas_src>
import jax
import jax.numpy as jnp
from jax.experimental import pallas as pl
from jax.experimental.pallas import tpu as pltpu

LANE = 128
SUBLANE = 8


def _round_up(x, m):
    return ((x + m - 1) // m) * m


def three_layer_net_kernel(x_ref,
                           w1_ref, b1_ref,
                           w2_ref, b2_ref,
                           w3_ref, b3_ref,
                           w4_ref, b4_ref,
                           o_ref):
    """One batch tile of: sigmoid(L1) -> relu(L2) -> relu(L3) -> L4 (no act)."""
    # x arrives in its original f32 layout; cast to the MXU operand dtype here.
    x = x_ref[...].astype(w1_ref.dtype)

    # hidden1 + sigmoid (f32 accumulate, f32 EUP sigmoid)
    h = jnp.dot(x, w1_ref[...], preferred_element_type=jnp.float32) + b1_ref[...]
    h = jax.nn.sigmoid(h)

    # hidden2 + relu
    h = jnp.dot(h.astype(w2_ref.dtype), w2_ref[...],
                preferred_element_type=jnp.float32) + b2_ref[...]
    h = jnp.maximum(h, 0.0)

    # hidden3 + relu
    h = jnp.dot(h.astype(w3_ref.dtype), w3_ref[...],
                preferred_element_type=jnp.float32) + b3_ref[...]
    h = jnp.maximum(h, 0.0)

    # predict (no activation) -> lane-dense (128-wide) store
    out = jnp.dot(h.astype(w4_ref.dtype), w4_ref[...],
                  preferred_element_type=jnp.float32) + b4_ref[...]
    o_ref[...] = out.astype(o_ref.dtype)


def prepare_params(params, *, mxu_dtype=jnp.bfloat16):
    """One-time prep (hoisted out of the per-call forward path): pad out-feature
    dims to 128-lane multiples (zeros; exact math preserved since padded sigmoid
    lanes hit zero-padded weight rows) and cast weights to the MXU dtype.
    Biases stay f32."""
    (w1, b1), (w2, b2), (w3, b3), (w4, b4) = params
    n_feature = w1.shape[0]
    d1 = _round_up(w1.shape[1], LANE)
    d2 = _round_up(w2.shape[1], LANE)
    d3 = _round_up(w3.shape[1], LANE)
    d4 = _round_up(w4.shape[1], LANE)

    def pad_to(a, rows, cols):
        return jnp.pad(a, ((0, rows - a.shape[0]), (0, cols - a.shape[1])))

    tensors = (
        pad_to(w1, n_feature, d1).astype(mxu_dtype), pad_to(b1, 1, d1),
        pad_to(w2, d1, d2).astype(mxu_dtype),        pad_to(b2, 1, d2),
        pad_to(w3, d2, d3).astype(mxu_dtype),        pad_to(b3, 1, d3),
        pad_to(w4, d3, d4).astype(mxu_dtype),        pad_to(b4, 1, d4),
    )
    return {
        "tensors": tensors,
        "n_output": w4.shape[1],
        "flop_dims": [w1.shape, w2.shape, w3.shape, w4.shape],  # real (unpadded) dims
    }


def three_layer_net(x, prepared, *, tm=1024, out_dtype=jnp.float32):
    """Batch-tiled forward; padded bf16 weights stay VMEM-resident across grid steps."""
    w1p, b1p, w2p, b2p, w3p, b3p, w4p, b4p = prepared["tensors"]
    n_output = prepared["n_output"]
    batch, n_feature = x.shape
    assert w1p.shape[0] == n_feature
    d4 = w4p.shape[1]

    # Batch tile: as big as tm for roofline, but capped so the grid has >= 2 steps
    # whenever batch allows (v7x: shard the "parallel" axis across both TCs).
    # No batch padding: Pallas masks the ragged last tile.
    tm_cap = max(SUBLANE, _round_up(pl.cdiv(batch, 2), SUBLANE))
    tm_eff = min(tm, tm_cap)
    grid = (pl.cdiv(batch, tm_eff),)

    def resident(a):
        # Same block every grid step -> stays VMEM-resident, no re-DMA.
        # TODO(synk): pipeline_mode=pl.Buffered(1) would halve the resident weight
        # footprint (matters on v7x once hidden dims grow); negligible at 128-wide.
        return pl.BlockSpec(a.shape, lambda i: (0, 0))

    # Explicit VMEM budget: residents (double-buffered by default), x/out tiles,
    # activation slabs; clamped to v7x physical (64 MiB), floored at 32 MiB.
    max_d = max(w1p.shape[1], w2p.shape[1], w3p.shape[1], d4)
    resident_bytes = sum(2 * int(a.size) * a.dtype.itemsize for a in prepared["tensors"])
    io_bytes = (2 * tm_eff * n_feature * x.dtype.itemsize
                + 2 * tm_eff * d4 * jnp.dtype(out_dtype).itemsize)
    act_bytes = 4 * tm_eff * max_d * 4
    vmem_limit = int(1.5 * (resident_bytes + io_bytes + act_bytes)) + (2 << 20)
    vmem_limit = min(max(vmem_limit, 32 << 20), 64 << 20)

    flops = 2 * batch * sum(fi * fo for fi, fo in prepared["flop_dims"])
    bytes_accessed = (int(x.size) * x.dtype.itemsize
                      + sum(int(a.size) * a.dtype.itemsize for a in prepared["tensors"])
                      + batch * d4 * jnp.dtype(out_dtype).itemsize)

    out_p = pl.pallas_call(
        three_layer_net_kernel,
        out_shape=jax.ShapeDtypeStruct((batch, d4), out_dtype),
        grid=grid,
        in_specs=[
            pl.BlockSpec((tm_eff, n_feature), lambda i: (i, 0)),   # x: tiled on batch
            resident(w1p), resident(b1p),
            resident(w2p), resident(b2p),
            resident(w3p), resident(b3p),
            resident(w4p), resident(b4p),
        ],
        out_specs=pl.BlockSpec((tm_eff, d4), lambda i: (i, 0)),
        compiler_params=pltpu.CompilerParams(
            dimension_semantics=("parallel",),
            vmem_limit_bytes=vmem_limit),
        cost_estimate=pl.CostEstimate(
            flops=flops,
            transcendentals=batch * prepared["flop_dims"][0][1],   # sigmoid
            bytes_accessed=bytes_accessed),
    )(x, w1p, b1p, w2p, b2p, w3p, b3p, w4p, b4p)

    return out_p[:, :n_output]


def init_params(key, n_feature, n_hidden, n_output):
    """Matches the module: hidden1(n_feature->n_hidden), hidden2(n_hidden->n_hidden-20),
    hidden3(n_hidden-20->n_hidden-20), predict(n_hidden-20->n_output).
    Weights stored (in, out); biases (1, out). PyTorch-default U(-1/sqrt(in), 1/sqrt(in))."""
    n_h2 = n_hidden - 20
    dims = [(n_feature, n_hidden), (n_hidden, n_h2), (n_h2, n_h2), (n_h2, n_output)]
    params = []
    for fan_in, fan_out in dims:
        key, kw, kb = jax.random.split(key, 3)
        bound = 1.0 / jnp.sqrt(fan_in)
        w = jax.random.uniform(kw, (fan_in, fan_out), jnp.float32, -bound, bound)
        b = jax.random.uniform(kb, (1, fan_out), jnp.float32, -bound, bound)
        params.append((w, b))
    return params


def reference_forward(x, params, mxu_dtype=jnp.bfloat16):
    """Pure-JAX reference using the same bf16-operand / f32-accumulate recipe.
    (Note: bf16 MXU operands differ from true f32 PyTorch output at ~1e-3 rel.)"""
    (w1, b1), (w2, b2), (w3, b3), (w4, b4) = params

    def lin(h, w, b):
        return jnp.dot(h.astype(mxu_dtype), w.astype(mxu_dtype),
                       preferred_element_type=jnp.float32) + b

    h = jax.nn.sigmoid(lin(x, w1, b1))
    h = jnp.maximum(lin(h, w2, b2), 0.0)
    h = jnp.maximum(lin(h, w3, b3), 0.0)
    return lin(h, w4, b4)


if __name__ == "__main__":
    # Small shapes consistent with the module (n_hidden must exceed 20).
    # batch=300 makes the grid 2 steps with a ragged last tile, exercising the
    # masked-store path and (on v7x) both TensorCores.
    batch, n_feature, n_hidden, n_output = 300, 16, 52, 4

    key = jax.random.PRNGKey(0)
    key, kx = jax.random.split(key)
    x = jax.random.normal(kx, (batch, n_feature), jnp.float32)
    params = init_params(key, n_feature, n_hidden, n_output)

    prepared = prepare_params(params)          # one-time pad + bf16 cast of weights
    out = three_layer_net(x, prepared)
    out = jax.block_until_ready(out)

    ref = reference_forward(x, params)
    assert out.shape == (batch, n_output)
    assert jnp.allclose(out, ref, atol=2e-3, rtol=2e-3), "mismatch vs reference"

    print("KERNEL_OK")
</pallas_src>

<mosaic_0001>
module attributes {stable_mosaic.version = 11 : i64} {
  func.func @three_layer_net_kernel(%arg0: i32, %arg1: memref<152x16xf32, #tpu.memory_space<vmem>>, %arg2: memref<16x128xbf16, #tpu.memory_space<vmem>>, %arg3: memref<1x128xf32, #tpu.memory_space<vmem>>, %arg4: memref<128x128xbf16, #tpu.memory_space<vmem>>, %arg5: memref<1x128xf32, #tpu.memory_space<vmem>>, %arg6: memref<128x128xbf16, #tpu.memory_space<vmem>>, %arg7: memref<1x128xf32, #tpu.memory_space<vmem>>, %arg8: memref<128x128xbf16, #tpu.memory_space<vmem>>, %arg9: memref<1x128xf32, #tpu.memory_space<vmem>>, %arg10: memref<152x128xf32, #tpu.memory_space<vmem>>) attributes {dimension_semantics = [#tpu.dimension_semantics<parallel>], iteration_bounds = array<i64: 2>, scalar_prefetch = 0 : i64, scratch_operands = 0 : i64, tpu.core_type = #tpu.core_type<tc>, window_params = [{transform_indices = @transform_0, window_bounds = array<i64: 152, 16>}, {pipeline_mode = #tpu.pipeline_mode<synchronous>, transform_indices = @transform_1, window_bounds = array<i64: 16, 128>}, {pipeline_mode = #tpu.pipeline_mode<synchronous>, transform_indices = @transform_2, window_bounds = array<i64: 1, 128>}, {pipeline_mode = #tpu.pipeline_mode<synchronous>, transform_indices = @transform_3, window_bounds = array<i64: 128, 128>}, {pipeline_mode = #tpu.pipeline_mode<synchronous>, transform_indices = @transform_4, window_bounds = array<i64: 1, 128>}, {pipeline_mode = #tpu.pipeline_mode<synchronous>, transform_indices = @transform_5, window_bounds = array<i64: 128, 128>}, {pipeline_mode = #tpu.pipeline_mode<synchronous>, transform_indices = @transform_6, window_bounds = array<i64: 1, 128>}, {pipeline_mode = #tpu.pipeline_mode<synchronous>, transform_indices = @transform_7, window_bounds = array<i64: 128, 128>}, {pipeline_mode = #tpu.pipeline_mode<synchronous>, transform_indices = @transform_8, window_bounds = array<i64: 1, 128>}, {transform_indices = @transform_9, window_bounds = array<i64: 152, 128>}]} {
    %c0 = arith.constant 0 : index
    %c0_0 = arith.constant 0 : index
    %0 = vector.load %arg1[%c0, %c0_0] : memref<152x16xf32, #tpu.memory_space<vmem>>, vector<152x16xf32>
    %1 = arith.truncf %0 : vector<152x16xf32> to vector<152x16xbf16>
    %c0_1 = arith.constant 0 : index
    %c0_2 = arith.constant 0 : index
    %2 = vector.load %arg2[%c0_1, %c0_2] : memref<16x128xbf16, #tpu.memory_space<vmem>>, vector<16x128xbf16>
    %cst = arith.constant dense<0.000000e+00> : vector<152x128xf32>
    %3 = tpu.matmul %1, %2, %cst {dimension_numbers = #tpu.dot_dimension_numbers<[1], [0], [0], [1], [0, 0, 1, 1], [], []>} : vector<152x16xbf16>, vector<16x128xbf16>, vector<152x128xf32> -> vector<152x128xf32>
    %c0_3 = arith.constant 0 : index
    %c0_4 = arith.constant 0 : index
    %4 = vector.load %arg3[%c0_3, %c0_4] : memref<1x128xf32, #tpu.memory_space<vmem>>, vector<1x128xf32>
    %5 = vector.broadcast %4 : vector<1x128xf32> to vector<152x128xf32>
    %6 = arith.addf %3, %5 : vector<152x128xf32>
    %7 = arith.negf %6 : vector<152x128xf32>
    %8 = math.exp %7 : vector<152x128xf32>
    %cst_5 = arith.constant 1.000000e+00 : f32
    %9 = vector.broadcast %cst_5 : f32 to vector<152x128xf32>
    %10 = arith.addf %9, %8 : vector<152x128xf32>
    %11 = arith.divf %9, %10 : vector<152x128xf32>
    %12 = arith.truncf %11 : vector<152x128xf32> to vector<152x128xbf16>
    %c0_6 = arith.constant 0 : index
    %c0_7 = arith.constant 0 : index
    %13 = vector.load %arg4[%c0_6, %c0_7] : memref<128x128xbf16, #tpu.memory_space<vmem>>, vector<128x128xbf16>
    %cst_8 = arith.constant dense<0.000000e+00> : vector<152x128xf32>
    %14 = tpu.matmul %12, %13, %cst_8 {dimension_numbers = #tpu.dot_dimension_numbers<[1], [0], [0], [1], [0, 0, 1, 1], [], []>} : vector<152x128xbf16>, vector<128x128xbf16>, vector<152x128xf32> -> vector<152x128xf32>
    %c0_9 = arith.constant 0 : index
    %c0_10 = arith.constant 0 : index
    %15 = vector.load %arg5[%c0_9, %c0_10] : memref<1x128xf32, #tpu.memory_space<vmem>>, vector<1x128xf32>
    %16 = vector.broadcast %15 : vector<1x128xf32> to vector<152x128xf32>
    %17 = arith.addf %14, %16 : vector<152x128xf32>
    %cst_11 = arith.constant 0.000000e+00 : f32
    %18 = vector.broadcast %cst_11 : f32 to vector<152x128xf32>
    %19 = arith.maximumf %17, %18 : vector<152x128xf32>
    %20 = arith.truncf %19 : vector<152x128xf32> to vector<152x128xbf16>
    %c0_12 = arith.constant 0 : index
    %c0_13 = arith.constant 0 : index
    %21 = vector.load %arg6[%c0_12, %c0_13] : memref<128x128xbf16, #tpu.memory_space<vmem>>, vector<128x128xbf16>
    %cst_14 = arith.constant dense<0.000000e+00> : vector<152x128xf32>
    %22 = tpu.matmul %20, %21, %cst_14 {dimension_numbers = #tpu.dot_dimension_numbers<[1], [0], [0], [1], [0, 0, 1, 1], [], []>} : vector<152x128xbf16>, vector<128x128xbf16>, vector<152x128xf32> -> vector<152x128xf32>
    %c0_15 = arith.constant 0 : index
    %c0_16 = arith.constant 0 : index
    %23 = vector.load %arg7[%c0_15, %c0_16] : memref<1x128xf32, #tpu.memory_space<vmem>>, vector<1x128xf32>
    %24 = vector.broadcast %23 : vector<1x128xf32> to vector<152x128xf32>
    %25 = arith.addf %22, %24 : vector<152x128xf32>
    %cst_17 = arith.constant 0.000000e+00 : f32
    %26 = vector.broadcast %cst_17 : f32 to vector<152x128xf32>
    %27 = arith.maximumf %25, %26 : vector<152x128xf32>
    %28 = arith.truncf %27 : vector<152x128xf32> to vector<152x128xbf16>
    %c0_18 = arith.constant 0 : index
    %c0_19 = arith.constant 0 : index
    %29 = vector.load %arg8[%c0_18, %c0_19] : memref<128x128xbf16, #tpu.memory_space<vmem>>, vector<128x128xbf16>
    %cst_20 = arith.constant dense<0.000000e+00> : vector<152x128xf32>
    %30 = tpu.matmul %28, %29, %cst_20 {dimension_numbers = #tpu.dot_dimension_numbers<[1], [0], [0], [1], [0, 0, 1, 1], [], []>} : vector<152x128xbf16>, vector<128x128xbf16>, vector<152x128xf32> -> vector<152x128xf32>
    %c0_21 = arith.constant 0 : index
    %c0_22 = arith.constant 0 : index
    %31 = vector.load %arg9[%c0_21, %c0_22] : memref<1x128xf32, #tpu.memory_space<vmem>>, vector<1x128xf32>
    %32 = vector.broadcast %31 : vector<1x128xf32> to vector<152x128xf32>
    %33 = arith.addf %30, %32 : vector<152x128xf32>
    %c0_23 = arith.constant 0 : index
    %c0_24 = arith.constant 0 : index
    %34 = vector.load %arg10[%c0_23, %c0_24] : memref<152x128xf32, #tpu.memory_space<vmem>>, vector<152x128xf32>
    tpu.vector_store %arg10[%c0_23, %c0_24], %33 {strides = array<i32>} : memref<152x128xf32, #tpu.memory_space<vmem>>, vector<152x128xf32>,
    return
  }
  func.func @transform_0(%arg0: i32) -> (i32, i32) {
    %c0_i32 = arith.constant 0 : i32
    %c0_i32_0 = arith.constant 0 : i32
    return %arg0, %c0_i32 : i32, i32
  }
  func.func @transform_1(%arg0: i32) -> (i32, i32) {
    %c0_i32 = arith.constant 0 : i32
    %c0_i32_0 = arith.constant 0 : i32
    %c0_i32_1 = arith.constant 0 : i32
    return %c0_i32, %c0_i32_0 : i32, i32
  }
  func.func @transform_2(%arg0: i32) -> (i32, i32) {
    %c0_i32 = arith.constant 0 : i32
    %c0_i32_0 = arith.constant 0 : i32
    %c0_i32_1 = arith.constant 0 : i32
    return %c0_i32, %c0_i32_0 : i32, i32
  }
  func.func @transform_3(%arg0: i32) -> (i32, i32) {
    %c0_i32 = arith.constant 0 : i32
    %c0_i32_0 = arith.constant 0 : i32
    %c0_i32_1 = arith.constant 0 : i32
    return %c0_i32, %c0_i32_0 : i32, i32
  }
  func.func @transform_4(%arg0: i32) -> (i32, i32) {
    %c0_i32 = arith.constant 0 : i32
    %c0_i32_0 = arith.constant 0 : i32
    %c0_i32_1 = arith.constant 0 : i32
    return %c0_i32, %c0_i32_0 : i32, i32
  }
  func.func @transform_5(%arg0: i32) -> (i32, i32) {
    %c0_i32 = arith.constant 0 : i32
    %c0_i32_0 = arith.constant 0 : i32
    %c0_i32_1 = arith.constant 0 : i32
    return %c0_i32, %c0_i32_0 : i32, i32
  }
  func.func @transform_6(%arg0: i32) -> (i32, i32) {
    %c0_i32 = arith.constant 0 : i32
    %c0_i32_0 = arith.constant 0 : i32
    %c0_i32_1 = arith.constant 0 : i32
    return %c0_i32, %c0_i32_0 : i32, i32
  }
  func.func @transform_7(%arg0: i32) -> (i32, i32) {
    %c0_i32 = arith.constant 0 : i32
    %c0_i32_0 = arith.constant 0 : i32
    %c0_i32_1 = arith.constant 0 : i32
    return %c0_i32, %c0_i32_0 : i32, i32
  }
  func.func @transform_8(%arg0: i32) -> (i32, i32) {
    %c0_i32 = arith.constant 0 : i32
    %c0_i32_0 = arith.constant 0 : i32
    %c0_i32_1 = arith.constant 0 : i32
    return %c0_i32, %c0_i32_0 : i32, i32
  }
  func.func @transform_9(%arg0: i32) -> (i32, i32) {
    %c0_i32 = arith.constant 0 : i32
    %c0_i32_0 = arith.constant 0 : i32
    return %arg0, %c0_i32 : i32, i32
  }
}

</mosaic_0001>

<llo_original>
// kernel: tpu_custom_call.1
$region0: #{tpu_custom_call.1}
  #allocation0 [shape = 'u32[]', space=smem, size = 0x4, offset = 0x4, fixed_abs, tag = 'smem constant byte address 0x4 - core index']
  #allocation1 [shape = 'u32[144,128]{1,0:T(1,128)}', space=vmem, size = 0x12000, scoped, tag = 'internal scratch']
  %s0 = inlined_call_operand.vmem [shape: f32[300,16], index: 0, kind: input, shape index: {}]
  %s1 = inlined_call_operand.vmem [shape: bf16[16,128], index: 1, kind: input, shape index: {}]
  %s2 = inlined_call_operand.vmem [shape: f32[1,128], index: 2, kind: input, shape index: {}]
  %s3 = inlined_call_operand.vmem [shape: bf16[128,128], index: 3, kind: input, shape index: {}]
  %s4 = inlined_call_operand.vmem [shape: f32[1,128], index: 4, kind: input, shape index: {}]
  %s5 = inlined_call_operand.vmem [shape: bf16[128,128], index: 5, kind: input, shape index: {}]
  %s6 = inlined_call_operand.vmem [shape: f32[1,128], index: 6, kind: input, shape index: {}]
  %s7 = inlined_call_operand.vmem [shape: bf16[128,128], index: 7, kind: input, shape index: {}]
  %s8 = inlined_call_operand.vmem [shape: f32[1,128], index: 8, kind: input, shape index: {}]
  %s9 = inlined_call_operand.hbm [shape: f32[300,128], index: 9, kind: output, shape index: {}]
  %s10 = sld [smem:[#allocation0]]
  $region69: #{tpu_custom_call.1} parent=0
    _
  %s12 = ssub.s32 1, %s10
  %s13 = scalar_select 0, %s12, %s10
  $region1: #{tpu_custom_call.1} parent=0
    #allocation2 [shape = 'u8[155648]{0}', space=vmem, size = 0x26000, scoped, tag = 'output window, operand 0']
    #allocation3 [shape = 's32[2]{0}', space=sflag, size = 0x8, scoped, tag = 'scoped memory for tpu_custom_call.1']
    %14 = vsyncpa [#allocation3], 0
    %s15 = scalar_lea.sflag [#allocation3], 1
    %16 = vsyncpa %s15, 0
    loop: start=0, step=1, limit=4
    $region2: #{tpu_custom_call.1} parent=1 // loop_pre_header
      _
    $region3: #{tpu_custom_call.1} parent=1 // loop_header
      %s18 = sphi 0, %s22
      %p19 = scmp.ge.s32.totalorder %s18, 4
      %s28 = sphi 0, %s30
      %s31 = sphi 0, %s28
      %s32 = sphi 0, %s31
      %s48 = sphi 0, %s32
      %s52 = sphi 0, %s52
      %s54 = sphi 0, %s52
      %s55 = sphi 0, %s54
      %s69 = sphi 0, %s55
      %s73 = sphi 0, %s73
      %s75 = sphi 0, %s73
      %s76 = sphi 0, %s75
      %s90 = sphi 0, %s76
      %s94 = sphi 0, %s94
      %s96 = sphi 0, %s94
      %s97 = sphi 0, %s96
      %s111 = sphi 0, %s97
      %s115 = sphi 0, %s115
      %s117 = sphi 0, %s115
      %s118 = sphi 0, %s117
      %s132 = sphi 0, %s118
      %s136 = sphi 0, %s136
      %s138 = sphi 0, %s136
      %s139 = sphi 0, %s138
      %s153 = sphi 0, %s139
      %s157 = sphi 0, %s157
      %s159 = sphi 0, %s157
      %s160 = sphi 0, %s159
      %s174 = sphi 0, %s160
      %s178 = sphi 0, %s178
      %s180 = sphi 0, %s178
      %s181 = sphi 0, %s180
      %s195 = sphi 0, %s181
      %s199 = sphi 0, %s199
      %s201 = sphi 0, %s199
      %s202 = sphi 0, %s201
      %s216 = sphi 0, %s202
      %s222 = sphi 0, %s224
      %s225 = sphi 0, %s222
      %s226 = sphi 0, %s225
      %s242 = sphi 0, %s226
    $region4: #{tpu_custom_call.1} parent=1 // loop_header_branch
      %21 = sbr.rel (%p19) target = $region8
    $region5: #{tpu_custom_call.1} parent=1 // loop_body
      %s23 = ssub.s32 %s18, 1
      %s24 = ssub.s32 %s18, 2
      %s25 = sadd.s32 %s18, 1
      %s26 = ssub.s32 %s18, %s25
      %p27 = scmp.eq.s32.totalorder %s26, 0
      %s29 = sadd.s32 %s28, 1
      %s30 = scalar_select %p27, %s28, %s29
      %p33 = pneg %p27
      %p34 = scmp.eq.s32.totalorder %s18, 1
      %p35 = por %p33, %p34
      %p36 = scmp.ne.s32.totalorder %s28, %s31
      %p37 = scmp.eq.s32.totalorder %s18, 0
      %p38 = por %p36, %p37
      %p39 = scmp.ne.s32.totalorder %s28, %s31
      %p40 = scmp.eq.s32.totalorder %s23, 1
      %p41 = por %p39, %p40
      %p42 = scmp.ne.s32.totalorder %s31, %s32
      %p43 = scmp.eq.s32.totalorder %s23, 0
      %p44 = por %p42, %p43
      %p45 = scmp.ne.s32.totalorder %s31, %s32
      %p46 = scmp.eq.s32.totalorder %s24, 1
      %p47 = por %p45, %p46
      %p49 = scmp.ne.s32.totalorder %s32, %s48
      %p50 = scmp.eq.s32.totalorder %s24, 0
      %p51 = por %p49, %p50
      %s53 = sadd.s32 %s52, 1
      %p56 = scmp.eq.s32.totalorder %s18, 1
      %p57 = scmp.ne.s32.totalorder %s52, %s54
      %p58 = scmp.eq.s32.totalorder %s18, 0
      %p59 = por %p57, %p58
      %p60 = scmp.ne.s32.totalorder %s52, %s54
      %p61 = scmp.eq.s32.totalorder %s23, 1
      %p62 = por %p60, %p61
      %p63 = scmp.ne.s32.totalorder %s54, %s55
      %p64 = scmp.eq.s32.totalorder %s23, 0
      %p65 = por %p63, %p64
      %p66 = scmp.ne.s32.totalorder %s54, %s55
      %p67 = scmp.eq.s32.totalorder %s24, 1
      %p68 = por %p66, %p67
      %p70 = scmp.ne.s32.totalorder %s55, %s69
      %p71 = scmp.eq.s32.totalorder %s24, 0
      %p72 = por %p70, %p71
      %s74 = sadd.s32 %s73, 1
      %p77 = scmp.eq.s32.totalorder %s18, 1
      %p78 = scmp.ne.s32.totalorder %s73, %s75
      %p79 = scmp.eq.s32.totalorder %s18, 0
      %p80 = por %p78, %p79
      %p81 = scmp.ne.s32.totalorder %s73, %s75
      %p82 = scmp.eq.s32.totalorder %s23, 1
      %p83 = por %p81, %p82
      %p84 = scmp.ne.s32.totalorder %s75, %s76
      %p85 = scmp.eq.s32.totalorder %s23, 0
      %p86 = por %p84, %p85
      %p87 = scmp.ne.s32.totalorder %s75, %s76
      %p88 = scmp.eq.s32.totalorder %s24, 1
      %p89 = por %p87, %p88
      %p91 = scmp.ne.s32.totalorder %s76, %s90
      %p92 = scmp.eq.s32.totalorder %s24, 0
      %p93 = por %p91, %p92
      %s95 = sadd.s32 %s94, 1
      %p98 = scmp.eq.s32.totalorder %s18, 1
      %p99 = scmp.ne.s32.totalorder %s94, %s96
      %p100 = scmp.eq.s32.totalorder %s18, 0
      %p101 = por %p99, %p100
      %p102 = scmp.ne.s32.totalorder %s94, %s96
      %p103 = scmp.eq.s32.totalorder %s23, 1
      %p104 = por %p102, %p103
      %p105 = scmp.ne.s32.totalorder %s96, %s97
      %p106 = scmp.eq.s32.totalorder %s23, 0
      %p107 = por %p105, %p106
      %p108 = scmp.ne.s32.totalorder %s96, %s97
      %p109 = scmp.eq.s32.totalorder %s24, 1
      %p110 = por %p108, %p109
      %p112 = scmp.ne.s32.totalorder %s97, %s111
      %p113 = scmp.eq.s32.totalorder %s24, 0
      %p114 = por %p112, %p113
      %s116 = sadd.s32 %s115, 1
      %p119 = scmp.eq.s32.totalorder %s18, 1
      %p120 = scmp.ne.s32.totalorder %s115, %s117
      %p121 = scmp.eq.s32.totalorder %s18, 0
      %p122 = por %p120, %p121
      %p123 = scmp.ne.s32.totalorder %s115, %s117
      %p124 = scmp.eq.s32.totalorder %s23, 1
      %p125 = por %p123, %p124
      %p126 = scmp.ne.s32.totalorder %s117, %s118
      %p127 = scmp.eq.s32.totalorder %s23, 0
      %p128 = por %p126, %p127
      %p129 = scmp.ne.s32.totalorder %s117, %s118
      %p130 = scmp.eq.s32.totalorder %s24, 1
      %p131 = por %p129, %p130
      %p133 = scmp.ne.s32.totalorder %s118, %s132
      %p134 = scmp.eq.s32.totalorder %s24, 0
      %p135 = por %p133, %p134
      %s137 = sadd.s32 %s136, 1
      %p140 = scmp.eq.s32.totalorder %s18, 1
      %p141 = scmp.ne.s32.totalorder %s136, %s138
      %p142 = scmp.eq.s32.totalorder %s18, 0
      %p143 = por %p141, %p142
      %p144 = scmp.ne.s32.totalorder %s136, %s138
      %p145 = scmp.eq.s32.totalorder %s23, 1
      %p146 = por %p144, %p145
      %p147 = scmp.ne.s32.totalorder %s138, %s139
      %p148 = scmp.eq.s32.totalorder %s23, 0
      %p149 = por %p147, %p148
      %p150 = scmp.ne.s32.totalorder %s138, %s139
      %p151 = scmp.eq.s32.totalorder %s24, 1
      %p152 = por %p150, %p151
      %p154 = scmp.ne.s32.totalorder %s139, %s153
      %p155 = scmp.eq.s32.totalorder %s24, 0
      %p156 = por %p154, %p155
      %s158 = sadd.s32 %s157, 1
      %p161 = scmp.eq.s32.totalorder %s18, 1
      %p162 = scmp.ne.s32.totalorder %s157, %s159
      %p163 = scmp.eq.s32.totalorder %s18, 0
      %p164 = por %p162, %p163
      %p165 = scmp.ne.s32.totalorder %s157, %s159
      %p166 = scmp.eq.s32.totalorder %s23, 1
      %p167 = por %p165, %p166
      %p168 = scmp.ne.s32.totalorder %s159, %s160
      %p169 = scmp.eq.s32.totalorder %s23, 0
      %p170 = por %p168, %p169
      %p171 = scmp.ne.s32.totalorder %s159, %s160
      %p172 = scmp.eq.s32.totalorder %s24, 1
      %p173 = por %p171, %p172
      %p175 = scmp.ne.s32.totalorder %s160, %s174
      %p176 = scmp.eq.s32.totalorder %s24, 0
      %p177 = por %p175, %p176
      %s179 = sadd.s32 %s178, 1
      %p182 = scmp.eq.s32.totalorder %s18, 1
      %p183 = scmp.ne.s32.totalorder %s178, %s180
      %p184 = scmp.eq.s32.totalorder %s18, 0
      %p185 = por %p183, %p184
      %p186 = scmp.ne.s32.totalorder %s178, %s180
      %p187 = scmp.eq.s32.totalorder %s23, 1
      %p188 = por %p186, %p187
      %p189 = scmp.ne.s32.totalorder %s180, %s181
      %p190 = scmp.eq.s32.totalorder %s23, 0
      %p191 = por %p189, %p190
      %p192 = scmp.ne.s32.totalorder %s180, %s181
      %p193 = scmp.eq.s32.totalorder %s24, 1
      %p194 = por %p192, %p193
      %p196 = scmp.ne.s32.totalorder %s181, %s195
      %p197 = scmp.eq.s32.totalorder %s24, 0
      %p198 = por %p196, %p197
      %s200 = sadd.s32 %s199, 1
      %p203 = scmp.eq.s32.totalorder %s18, 1
      %p204 = scmp.ne.s32.totalorder %s199, %s201
      %p205 = scmp.eq.s32.totalorder %s18, 0
      %p206 = por %p204, %p205
      %p207 = scmp.ne.s32.totalorder %s199, %s201
      %p208 = scmp.eq.s32.totalorder %s23, 1
      %p209 = por %p207, %p208
      %p210 = scmp.ne.s32.totalorder %s201, %s202
      %p211 = scmp.eq.s32.totalorder %s23, 0
      %p212 = por %p210, %p211
      %p213 = scmp.ne.s32.totalorder %s201, %s202
      %p214 = scmp.eq.s32.totalorder %s24, 1
      %p215 = por %p213, %p214
      %p217 = scmp.ne.s32.totalorder %s202, %s216
      %p218 = scmp.eq.s32.totalorder %s24, 0
      %p219 = por %p217, %p218
      %s220 = ssub.s32 %s18, %s25
      %p221 = scmp.eq.s32.totalorder %s220, 0
      %s223 = sadd.s32 %s222, 1
      %s224 = scalar_select %p221, %s222, %s223
      %p227 = pneg %p221
      %p228 = scmp.eq.s32.totalorder %s18, 1
      %p229 = por %p227, %p228
      %p230 = scmp.ne.s32.totalorder %s222, %s225
      %p231 = scmp.eq.s32.totalorder %s18, 0
      %p232 = por %p230, %p231
      %p233 = scmp.ne.s32.totalorder %s222, %s225
      %p234 = scmp.eq.s32.totalorder %s23, 1
      %p235 = por %p233, %p234
      %p236 = scmp.ne.s32.totalorder %s225, %s226
      %p237 = scmp.eq.s32.totalorder %s23, 0
      %p238 = por %p236, %p237
      %p239 = scmp.ne.s32.totalorder %s225, %s226
      %p240 = scmp.eq.s32.totalorder %s24, 1
      %p241 = por %p239, %p240
      %p243 = scmp.ne.s32.totalorder %s226, %s242
      %p244 = scmp.eq.s32.totalorder %s24, 0
      %p245 = por %p243, %p244
      %p246 = scmp.le.s32.totalorder 1, %s18
      %p247 = scmp.lt.s32.totalorder %s18, 3
      %p248 = pnand %p246, %p247
      %p249 = pneg %p248
      // Predicated region
      $region9: #{tpu_custom_call.1} parent=5 // pred_check
        _
      $region10: #{tpu_custom_call.1} parent=5 // pred_check_branch
        %251 = sbr.rel (%p248) target = $region12
      $region11: #{tpu_custom_call.1} parent=5 // pred_region
        %s252 = ssub.s32 %s18, 1
        // Predicated region
        $region13: #{tpu_custom_call.1} parent=11 // pred_check
          %p253 = pneg %p65
        $region14: #{tpu_custom_call.1} parent=11 // pred_check_branch
          %255 = sbr.rel (%p253) target = $region16
        $region15: #{tpu_custom_call.1} parent=11 // pred_region
          _
        $region16: #{tpu_custom_call.1} parent=11 // pred_fallthru
          _
        // Predicated region
        $region17: #{tpu_custom_call.1} parent=11 // pred_check
          %p256 = pneg %p86
        $region18: #{tpu_custom_call.1} parent=11 // pred_check_branch
          %258 = sbr.rel (%p256) target = $region20
        $region19: #{tpu_custom_call.1} parent=11 // pred_region
          _
        $region20: #{tpu_custom_call.1} parent=11 // pred_fallthru
          _
        // Predicated region
        $region21: #{tpu_custom_call.1} parent=11 // pred_check
          %p259 = pneg %p107
        $region22: #{tpu_custom_call.1} parent=11 // pred_check_branch
          %261 = sbr.rel (%p259) target = $region24
        $region23: #{tpu_custom_call.1} parent=11 // pred_region
          _
        $region24: #{tpu_custom_call.1} parent=11 // pred_fallthru
          _
        // Predicated region
        $region25: #{tpu_custom_call.1} parent=11 // pred_check
          %p262 = pneg %p128
        $region26: #{tpu_custom_call.1} parent=11 // pred_check_branch
          %264 = sbr.rel (%p262) target = $region28
        $region27: #{tpu_custom_call.1} parent=11 // pred_region
          _
        $region28: #{tpu_custom_call.1} parent=11 // pred_fallthru
          _
        // Predicated region
        $region29: #{tpu_custom_call.1} parent=11 // pred_check
          %p265 = pneg %p149
        $region30: #{tpu_custom_call.1} parent=11 // pred_check_branch
          %267 = sbr.rel (%p265) target = $region32
        $region31: #{tpu_custom_call.1} parent=11 // pred_region
          _
        $region32: #{tpu_custom_call.1} parent=11 // pred_fallthru
          _
        // Predicated region
        $region33: #{tpu_custom_call.1} parent=11 // pred_check
          %p268 = pneg %p170
        $region34: #{tpu_custom_call.1} parent=11 // pred_check_branch
          %270 = sbr.rel (%p268) target = $region36
        $region35: #{tpu_custom_call.1} parent=11 // pred_region
          _
        $region36: #{tpu_custom_call.1} parent=11 // pred_fallthru
          _
        // Predicated region
        $region37: #{tpu_custom_call.1} parent=11 // pred_check
          %p271 = pneg %p191
        $region38: #{tpu_custom_call.1} parent=11 // pred_check_branch
          %273 = sbr.rel (%p271) target = $region40
        $region39: #{tpu_custom_call.1} parent=11 // pred_region
          _
        $region40: #{tpu_custom_call.1} parent=11 // pred_fallthru
          _
        // Predicated region
        $region41: #{tpu_custom_call.1} parent=11 // pred_check
          %p274 = pneg %p212
        $region42: #{tpu_custom_call.1} parent=11 // pred_check_branch
          %276 = sbr.rel (%p274) target = $region44
        $region43: #{tpu_custom_call.1} parent=11 // pred_region
          _
        $region44: #{tpu_custom_call.1} parent=11 // pred_fallthru
          _
      $region12: #{tpu_custom_call.1} parent=5 // pred_fallthru
        _
      %p277 = scmp.lt.s32.totalorder %s18, 2
      // Predicated region
      $region45: #{tpu_custom_call.1} parent=5 // pred_check
        %p278 = pneg %p277
      $region46: #{tpu_custom_call.1} parent=5 // pred_check_branch
        %280 = sbr.rel (%p278) target = $region48
      $region47: #{tpu_custom_call.1} parent=5 // pred_region
        // Predicated region
        $region49: #{tpu_custom_call.1} parent=47 // pred_check
          %p281 = pneg %p38
        $region50: #{tpu_custom_call.1} parent=47 // pred_check_branch
          %283 = sbr.rel (%p281) target = $region52
        $region51: #{tpu_custom_call.1} parent=47 // pred_region
          %s284 = smul.u32 19, %s18
          %p285 = scmp.lt.s32.totalorder %s284, 37
          %s286 = scalar_select %p285, %s284, 37
          %s287 = smul.addr %s286, 8
          %s288 = scalar_lea.vmem %s0, %s287
          %s289 = smul.u32 19, %s18
        $region52: #{tpu_custom_call.1} parent=47 // pred_fallthru
          _
      $region48: #{tpu_custom_call.1} parent=5 // pred_fallthru
        _
      %p290 = scmp.le.s32.totalorder 1, %s18
      %p291 = scmp.lt.s32.totalorder %s18, 3
      %p292 = pnand %p290, %p291
      %p293 = pneg %p292
      // Predicated region
      $region53: #{tpu_custom_call.1} parent=5 // pred_check
        _
      $region54: #{tpu_custom_call.1} parent=5 // pred_check_branch
        %295 = sbr.rel (%p292) target = $region56
      $region55: #{tpu_custom_call.1} parent=5 // pred_region
        %s296 = ssub.s32 %s18, 1
        %s297 = smul.u32 19, %s23
        %p298 = scmp.lt.s32.totalorder %s297, 37
        %s299 = scalar_select %p298, %s297, 37
        %s300 = smul.addr %s299, 8
        %s301 = scalar_lea.vmem %s0, %s300
        %p302 = pneg %p44
        %p303 = pneg %p41
        %p304 = pneg %p65
        %p305 = pneg %p62
        %p306 = pneg %p86
        %p307 = pneg %p83
        %p308 = pneg %p107
        %p309 = pneg %p104
        %p310 = pneg %p128
        %p311 = pneg %p125
        %p312 = pneg %p149
        %p313 = pneg %p146
        %p314 = pneg %p170
        %p315 = pneg %p167
        %p316 = pneg %p191
        %p317 = pneg %p188
        %p318 = pneg %p212
        %p319 = pneg %p209
        %p320 = pneg %p238
        %p321 = pneg %p235
        %s322 = sand.u32 %s225, 1
        %s323 = scalar_lea.sflag [#allocation3], %s322
        %s324 = sand.u32 %s225, 1
        %s325 = smul.addr %s324, 152
        %s326 = scalar_lea.vmem [#allocation2], %s325
        %s327 = smul.u32 19, %s23
        %p328 = scmp.lt.s32.totalorder %s327, 37
        %s329 = scalar_select %p328, %s327, 37
        %s330 = smul.addr %s329, 8
        %s331 = scalar_lea.vmem %s0, %s330
        %s332 = smul.u32 19, %s23
        %s333 = smul.u32 19, %s23
        %v335 = vld [vmem:[%s331] sm:$0xff]
        %v336 = vld [vmem:[%s331 + $0x8] sm:$0xff]
        %v337 = vld [vmem:[%s331 + $0x10] sm:$0xff]
        %v338 = vld [vmem:[%s331 + $0x18] sm:$0xff]
        %v339 = vld [vmem:[%s331 + $0x20] sm:$0xff]
        %v340 = vld [vmem:[%s331 + $0x28] sm:$0xff]
        %v341 = vld [vmem:[%s331 + $0x30] sm:$0xff]
        %v342 = vld [vmem:[%s331 + $0x38] sm:$0xff]
        %v343 = vld [vmem:[%s331 + $0x40] sm:$0xff]
        %v344 = vld [vmem:[%s331 + $0x48] sm:$0xff]
        %v345 = vld [vmem:[%s331 + $0x50] sm:$0xff]
        %v346 = vld [vmem:[%s331 + $0x58] sm:$0xff]
        %v347 = vld [vmem:[%s331 + $0x60] sm:$0xff]
        %v348 = vld [vmem:[%s331 + $0x68] sm:$0xff]
        %v349 = vld [vmem:[%s331 + $0x70] sm:$0xff]
        %v350 = vld [vmem:[%s331 + $0x78] sm:$0xff]
        %v351 = vld [vmem:[%s331 + $0x80] sm:$0xff]
        %v352 = vld [vmem:[%s331 + $0x88] sm:$0xff]
        %v353 = vld [vmem:[%s331 + $0x90] sm:$0xff]
        %v354 = vpack.c.bf16 %v336, %v335
        %v355 = vpack.c.bf16 %v338, %v337
        %v356 = vpack.c.bf16 %v340, %v339
        %v357 = vpack.c.bf16 %v342, %v341
        %v358 = vpack.c.bf16 %v344, %v343
        %v359 = vpack.c.bf16 %v346, %v345
        %v360 = vpack.c.bf16 %v348, %v347
        %v361 = vpack.c.bf16 %v350, %v349
        %v362 = vpack.c.bf16 %v352, %v351
        %v363 = vpack.c.bf16 %v353, %v353
        %v364 = vld [vmem:[%s1] sm:$0xf]
        %v365 = vld [vmem:[%s1 + $0x4] sm:$0xf]
        %v366 = vld [vmem:[%s2] sm:$0x1]
        %v368 = vlaneseq
        %v369 = vshrl.u32 %v368, 7
        %v370 = vsub.s32 0, %v369
        %v371 = vrot.slane %v366, %v370
        %v375 = vunpack.c.l.b16 %v364
        %v376 = vunpack.c.l.b16 %v365
        %v377 = vpack.c.b16 %v376, %v375
        %vm379 = vcmask 130048
        %v381 = vsel %vm379, %v354, 0
        %v384 = vsel %vm379, %v355, 0
        %v387 = vsel %vm379, %v356, 0
        %v390 = vsel %vm379, %v357, 0
        %v393 = vsel %vm379, %v358, 0
        %v396 = vsel %vm379, %v359, 0
        %v399 = vsel %vm379, %v360, 0
        %v402 = vsel %vm379, %v361, 0
        %v405 = vsel %vm379, %v362, 0
        %v408 = vsel %vm379, %v363, 0
        %410 = vmatprep.subr.bf16.mxu0 0
        %411 = vmatpush1.bf16.msra.mxu0 %v377
        %412 = vmatprep.subr.bf16.mxu0 0
        %413 = vmatpush1.bf16.msra.mxu0 0
        %414 = vmatprep.subr.bf16.mxu0 0
        %415 = vmatpush1.bf16.msra.mxu0 0
        %416 = vmatprep.subr.bf16.mxu0 0
        %417 = vmatpush1.bf16.msra.mxu0 0
        %418 = vmatprep.subr.bf16.mxu0 0
        %419 = vmatpush1.bf16.msra.mxu0 0
        %420 = vmatprep.subr.bf16.mxu0 0
        %421 = vmatpush1.bf16.msra.mxu0 0
        %422 = vmatprep.subr.bf16.mxu0 0
        %423 = vmatpush1.bf16.msra.mxu0 0
        %424 = vmatprep.subr.bf16.mxu0 0
        %425 = vmatpush1.bf16.msra.mxu0 0
        %426 = vmatprep.subr.bf16.mxu0 0
        %427 = vmatpush1.bf16.msra.mxu0 0
        %428 = vmatprep.subr.bf16.mxu0 0
        %429 = vmatpush1.bf16.msra.mxu0 0
        %430 = vmatprep.subr.bf16.mxu0 0
        %431 = vmatpush1.bf16.msra.mxu0 0
        %432 = vmatprep.subr.bf16.mxu0 0
        %433 = vmatpush1.bf16.msra.mxu0 0
        %434 = vmatprep.subr.bf16.mxu0 0
        %435 = vmatpush1.bf16.msra.mxu0 0
        %436 = vmatprep.subr.bf16.mxu0 0
        %437 = vmatpush1.bf16.msra.mxu0 0
        %438 = vmatprep.subr.bf16.mxu0 0
        %439 = vmatpush1.bf16.msra.mxu0 0
        %440 = vmatprep.subr.bf16.mxu0 0
        %441 = vmatpush1.bf16.msra.mxu0 0
        %442 = vmatprep.mubr.bf16.mxu0 0
        %443 = vmatmul.mubr.bf16.gmra.mrb[0].mxu0 %v381
        %v444 = vpop.f32.mrb[0].mxu0
        %v445 = vadd.f32 %v371, %v444
        %v446 = vpop.f32.mrb[0].mxu0
        %v447 = vpop.f32.mrb[0].mxu0
        %v448 = vadd.f32 %v371, %v447
        %v449 = vpop.f32.mrb[0].mxu0
        %450 = vmatprep.mubr.bf16.mxu0 0
        %451 = vmatmul.mubr.bf16.gmra.mrb[0].mxu0 %v384
        %v452 = vpop.f32.mrb[0].mxu0
        %v453 = vadd.f32 %v371, %v452
        %v454 = vpop.f32.mrb[0].mxu0
        %v455 = vpop.f32.mrb[0].mxu0
        %v456 = vadd.f32 %v371, %v455
        %v457 = vpop.f32.mrb[0].mxu0
        %458 = vmatprep.mubr.bf16.mxu0 0
        %459 = vmatmul.mubr.bf16.gmra.mrb[0].mxu0 %v387
        %v460 = vpop.f32.mrb[0].mxu0
        %v461 = vadd.f32 %v371, %v460
        %v462 = vpop.f32.mrb[0].mxu0
        %v463 = vpop.f32.mrb[0].mxu0
        %v464 = vadd.f32 %v371, %v463
        %v465 = vpop.f32.mrb[0].mxu0
        %466 = vmatprep.mubr.bf16.mxu0 0
        %467 = vmatmul.mubr.bf16.gmra.mrb[0].mxu0 %v390
        %v468 = vpop.f32.mrb[0].mxu0
        %v469 = vadd.f32 %v371, %v468
        %v470 = vpop.f32.mrb[0].mxu0
        %v471 = vpop.f32.mrb[0].mxu0
        %v472 = vadd.f32 %v371, %v471
        %v473 = vpop.f32.mrb[0].mxu0
        %474 = vmatprep.mubr.bf16.mxu0 0
        %475 = vmatmul.mubr.bf16.gmra.mrb[0].mxu0 %v393
        %v476 = vpop.f32.mrb[0].mxu0
        %v477 = vadd.f32 %v371, %v476
        %v478 = vpop.f32.mrb[0].mxu0
        %v479 = vpop.f32.mrb[0].mxu0
        %v480 = vadd.f32 %v371, %v479
        %v481 = vpop.f32.mrb[0].mxu0
        %482 = vmatprep.mubr.bf16.mxu0 0
        %483 = vmatmul.mubr.bf16.gmra.mrb[0].mxu0 %v396
        %v484 = vpop.f32.mrb[0].mxu0
        %v485 = vadd.f32 %v371, %v484
        %v486 = vpop.f32.mrb[0].mxu0
        %v487 = vpop.f32.mrb[0].mxu0
        %v488 = vadd.f32 %v371, %v487
        %v489 = vpop.f32.mrb[0].mxu0
        %490 = vmatprep.mubr.bf16.mxu0 0
        %491 = vmatmul.mubr.bf16.gmra.mrb[0].mxu0 %v399
        %v492 = vpop.f32.mrb[0].mxu0
        %v493 = vadd.f32 %v371, %v492
        %v494 = vpop.f32.mrb[0].mxu0
        %v495 = vpop.f32.mrb[0].mxu0
        %v496 = vadd.f32 %v371, %v495
        %v497 = vpop.f32.mrb[0].mxu0
        %498 = vmatprep.mubr.bf16.mxu0 0
        %499 = vmatmul.mubr.bf16.gmra.mrb[0].mxu0 %v402
        %v500 = vpop.f32.mrb[0].mxu0
        %v501 = vadd.f32 %v371, %v500
        %v502 = vpop.f32.mrb[0].mxu0
        %v503 = vpop.f32.mrb[0].mxu0
        %v504 = vadd.f32 %v371, %v503
        %v505 = vpop.f32.mrb[0].mxu0
        %506 = vmatprep.mubr.bf16.mxu0 0
        %507 = vmatmul.mubr.bf16.gmra.mrb[0].mxu0 %v405
        %v508 = vpop.f32.mrb[0].mxu0
        %v509 = vadd.f32 %v371, %v508
        %v510 = vpop.f32.mrb[0].mxu0
        %v511 = vpop.f32.mrb[0].mxu0
        %v512 = vadd.f32 %v371, %v511
        %v513 = vpop.f32.mrb[0].mxu0
        %514 = vmatprep.mubr.bf16.mxu0 0
        %515 = vmatmul.mubr.bf16.gmra.mrb[0].mxu0 %v408
        %v516 = vpop.f32.mrb[0].mxu0
        %v517 = vadd.f32 %v371, %v516
        %v518 = vpop.f32.mrb[0].mxu0
        %v519 = vpop.f32.mrb[0].mxu0
        %v520 = vpop.f32.mrb[0].mxu0
        %521 = vdwg.mxu0
        %v522 = vxor.u32 %v445, 2147483648
        %v523 = vxor.u32 %v448, 2147483648
        %v524 = vxor.u32 %v453, 2147483648
        %v525 = vxor.u32 %v456, 2147483648
        %v526 = vxor.u32 %v461, 2147483648
        %v527 = vxor.u32 %v464, 2147483648
        %v528 = vxor.u32 %v469, 2147483648
        %v529 = vxor.u32 %v472, 2147483648
        %v530 = vxor.u32 %v477, 2147483648
        %v531 = vxor.u32 %v480, 2147483648
        %v532 = vxor.u32 %v485, 2147483648
        %v533 = vxor.u32 %v488, 2147483648
        %v534 = vxor.u32 %v493, 2147483648
        %v535 = vxor.u32 %v496, 2147483648
        %v536 = vxor.u32 %v501, 2147483648
        %v537 = vxor.u32 %v504, 2147483648
        %v538 = vxor.u32 %v509, 2147483648
        %v539 = vxor.u32 %v512, 2147483648
        %v540 = vxor.u32 %v517, 2147483648
        %v541 = vmul.f32 %v522, 1.442695
        %v542 = vpow.pop %v541
        %v543 = vmul.f32 %v523, 1.442695
        %v544 = vpow.pop %v543
        %v545 = vmul.f32 %v524, 1.442695
        %v546 = vpow.pop %v545
        %v547 = vmul.f32 %v525, 1.442695
        %v548 = vpow.pop %v547
        %v549 = vmul.f32 %v526, 1.442695
        %v550 = vpow.pop %v549
        %v551 = vmul.f32 %v527, 1.442695
        %v552 = vpow.pop %v551
        %v553 = vmul.f32 %v528, 1.442695
        %v554 = vpow.pop %v553
        %v555 = vmul.f32 %v529, 1.442695
        %v556 = vpow.pop %v555
        %v557 = vmul.f32 %v530, 1.442695
        %v558 = vpow.pop %v557
        %v559 = vmul.f32 %v531, 1.442695
        %v560 = vpow.pop %v559
        %v561 = vmul.f32 %v532, 1.442695
        %v562 = vpow.pop %v561
        %v563 = vmul.f32 %v533, 1.442695
        %v564 = vpow.pop %v563
        %v565 = vmul.f32 %v534, 1.442695
        %v566 = vpow.pop %v565
        %v567 = vmul.f32 %v535, 1.442695
        %v568 = vpow.pop %v567
        %v569 = vmul.f32 %v536, 1.442695
        %v570 = vpow.pop %v569
        %v571 = vmul.f32 %v537, 1.442695
        %v572 = vpow.pop %v571
        %v573 = vmul.f32 %v538, 1.442695
        %v574 = vpow.pop %v573
        %v575 = vmul.f32 %v539, 1.442695
        %v576 = vpow.pop %v575
        %v577 = vmul.f32 %v540, 1.442695
        %v578 = vpow.pop %v577
        %v579 = vadd.f32 %v542, 1.0
        %v580 = vadd.f32 %v544, 1.0
        %v581 = vadd.f32 %v546, 1.0
        %v582 = vadd.f32 %v548, 1.0
        %v583 = vadd.f32 %v550, 1.0
        %v584 = vadd.f32 %v552, 1.0
        %v585 = vadd.f32 %v554, 1.0
        %v586 = vadd.f32 %v556, 1.0
        %v587 = vadd.f32 %v558, 1.0
        %v588 = vadd.f32 %v560, 1.0
        %v589 = vadd.f32 %v562, 1.0
        %v590 = vadd.f32 %v564, 1.0
        %v591 = vadd.f32 %v566, 1.0
        %v592 = vadd.f32 %v568, 1.0
        %v593 = vadd.f32 %v570, 1.0
        %v594 = vadd.f32 %v572, 1.0
        %v595 = vadd.f32 %v574, 1.0
        %v596 = vadd.f32 %v576, 1.0
        %v597 = vadd.f32 %v578, 1.0
        %v598 = vrcp.pop %v579
        %v599 = vmul.f32 1.0, %v598
        %v600 = vrcp.pop %v580
        %v601 = vmul.f32 1.0, %v600
        %v602 = vrcp.pop %v581
        %v603 = vmul.f32 1.0, %v602
        %v604 = vrcp.pop %v582
        %v605 = vmul.f32 1.0, %v604
        %v606 = vrcp.pop %v583
        %v607 = vmul.f32 1.0, %v606
        %v608 = vrcp.pop %v584
        %v609 = vmul.f32 1.0, %v608
        %v610 = vrcp.pop %v585
        %v611 = vmul.f32 1.0, %v610
        %v612 = vrcp.pop %v586
        %v613 = vmul.f32 1.0, %v612
        %v614 = vrcp.pop %v587
        %v615 = vmul.f32 1.0, %v614
        %v616 = vrcp.pop %v588
        %v617 = vmul.f32 1.0, %v616
        %v618 = vrcp.pop %v589
        %v619 = vmul.f32 1.0, %v618
        %v620 = vrcp.pop %v590
        %v621 = vmul.f32 1.0, %v620
        %v622 = vrcp.pop %v591
        %v623 = vmul.f32 1.0, %v622
        %v624 = vrcp.pop %v592
        %v625 = vmul.f32 1.0, %v624
        %v626 = vrcp.pop %v593
        %v627 = vmul.f32 1.0, %v626
        %v628 = vrcp.pop %v594
        %v629 = vmul.f32 1.0, %v628
        %v630 = vrcp.pop %v595
        %v631 = vmul.f32 1.0, %v630
        %v632 = vrcp.pop %v596
        %v633 = vmul.f32 1.0, %v632
        %v634 = vrcp.pop %v597
        %v635 = vmul.f32 1.0, %v634
        %v636 = vpack.c.bf16 %v601, %v599
        %v637 = vpack.c.bf16 %v605, %v603
        %v638 = vpack.c.bf16 %v609, %v607
        %v639 = vpack.c.bf16 %v613, %v611
        %v640 = vpack.c.bf16 %v617, %v615
        %v641 = vpack.c.bf16 %v621, %v619
        %v642 = vpack.c.bf16 %v625, %v623
        %v643 = vpack.c.bf16 %v629, %v627
        %v644 = vpack.c.bf16 %v633, %v631
        %v645 = vpack.c.bf16 %v635, %v635
        %v646 = vld [vmem:[%s3] sm:$0xf]
        %v647 = vld [vmem:[%s3 + $0x4] sm:$0xf]
        %v648 = vld [vmem:[%s3 + $0x8] sm:$0xf]
        %v649 = vld [vmem:[%s3 + $0xc] sm:$0xf]
        %v650 = vld [vmem:[%s3 + $0x10] sm:$0xf]
        %v651 = vld [vmem:[%s3 + $0x14] sm:$0xf]
        %v652 = vld [vmem:[%s3 + $0x18] sm:$0xf]
        %v653 = vld [vmem:[%s3 + $0x1c] sm:$0xf]
        %v654 = vld [vmem:[%s3 + $0x20] sm:$0xf]
        %v655 = vld [vmem:[%s3 + $0x24] sm:$0xf]
        %v656 = vld [vmem:[%s3 + $0x28] sm:$0xf]
        %v657 = vld [vmem:[%s3 + $0x2c] sm:$0xf]
        %v658 = vld [vmem:[%s3 + $0x30] sm:$0xf]
        %v659 = vld [vmem:[%s3 + $0x34] sm:$0xf]
        %v660 = vld [vmem:[%s3 + $0x38] sm:$0xf]
        %v661 = vld [vmem:[%s3 + $0x3c] sm:$0xf]
        %v662 = vld [vmem:[%s4] sm:$0x1]
        %v664 = vlaneseq
        %v665 = vshrl.u32 %v664, 7
        %v666 = vsub.s32 0, %v665
        %v667 = vrot.slane %v662, %v666
        %v685 = vunpack.c.l.b16 %v646
        %v686 = vunpack.c.l.b16 %v647
        %v687 = vunpack.c.l.b16 %v648
        %v688 = vunpack.c.l.b16 %v649
        %v689 = vunpack.c.l.b16 %v650
        %v690 = vunpack.c.l.b16 %v651
        %v691 = vunpack.c.l.b16 %v652
        %v692 = vunpack.c.l.b16 %v653
        %v693 = vunpack.c.l.b16 %v654
        %v694 = vunpack.c.l.b16 %v655
        %v695 = vunpack.c.l.b16 %v656
        %v696 = vunpack.c.l.b16 %v657
        %v697 = vunpack.c.l.b16 %v658
        %v698 = vunpack.c.l.b16 %v659
        %v699 = vunpack.c.l.b16 %v660
        %v700 = vunpack.c.l.b16 %v661
        %v701 = vpack.c.b16 %v686, %v685
        %v702 = vpack.c.b16 %v688, %v687
        %v703 = vpack.c.b16 %v690, %v689
        %v704 = vpack.c.b16 %v692, %v691
        %v705 = vpack.c.b16 %v694, %v693
        %v706 = vpack.c.b16 %v696, %v695
        %v707 = vpack.c.b16 %v698, %v697
        %v708 = vpack.c.b16 %v700, %v699
        %717 = vmatprep.subr.bf16.mxu0 0
        %718 = vmatpush1.bf16.msra.mxu0 %v701
        %719 = vmatprep.subr.bf16.mxu0 0
        %720 = vmatpush1.bf16.msra.mxu0 %v702
        %721 = vmatprep.subr.bf16.mxu0 0
        %722 = vmatpush1.bf16.msra.mxu0 %v703
        %723 = vmatprep.subr.bf16.mxu0 0
        %724 = vmatpush1.bf16.msra.mxu0 %v704
        %725 = vmatprep.subr.bf16.mxu0 0
        %726 = vmatpush1.bf16.msra.mxu0 %v705
        %727 = vmatprep.subr.bf16.mxu0 0
        %728 = vmatpush1.bf16.msra.mxu0 %v706
        %729 = vmatprep.subr.bf16.mxu0 0
        %730 = vmatpush1.bf16.msra.mxu0 %v707
        %731 = vmatprep.subr.bf16.mxu0 0
        %732 = vmatpush1.bf16.msra.mxu0 %v708
        %733 = vmatprep.subr.bf16.mxu0 0
        %734 = vmatpush1.bf16.msra.mxu0 0
        %735 = vmatprep.subr.bf16.mxu0 0
        %736 = vmatpush1.bf16.msra.mxu0 0
        %737 = vmatprep.subr.bf16.mxu0 0
        %738 = vmatpush1.bf16.msra.mxu0 0
        %739 = vmatprep.subr.bf16.mxu0 0
        %740 = vmatpush1.bf16.msra.mxu0 0
        %741 = vmatprep.subr.bf16.mxu0 0
        %742 = vmatpush1.bf16.msra.mxu0 0
        %743 = vmatprep.subr.bf16.mxu0 0
        %744 = vmatpush1.bf16.msra.mxu0 0
        %745 = vmatprep.subr.bf16.mxu0 0
        %746 = vmatpush1.bf16.msra.mxu0 0
        %747 = vmatprep.subr.bf16.mxu0 0
        %748 = vmatpush1.bf16.msra.mxu0 0
        %749 = vmatprep.mubr.bf16.mxu0 0
        %750 = vmatmul.mubr.bf16.gmra.mrb[0].mxu0 %v636
        %v751 = vpop.f32.mrb[0].mxu0
        %v752 = vadd.f32 %v667, %v751
        %v753 = vpop.f32.mrb[0].mxu0
        %v754 = vpop.f32.mrb[0].mxu0
        %v755 = vadd.f32 %v667, %v754
        %v756 = vpop.f32.mrb[0].mxu0
        %757 = vmatprep.mubr.bf16.mxu0 0
        %758 = vmatmul.mubr.bf16.gmra.mrb[0].mxu0 %v637
        %v759 = vpop.f32.mrb[0].mxu0
        %v760 = vadd.f32 %v667, %v759
        %v761 = vpop.f32.mrb[0].mxu0
        %v762 = vpop.f32.mrb[0].mxu0
        %v763 = vadd.f32 %v667, %v762
        %v764 = vpop.f32.mrb[0].mxu0
        %765 = vmatprep.mubr.bf16.mxu0 0
        %766 = vmatmul.mubr.bf16.gmra.mrb[0].mxu0 %v638
        %v767 = vpop.f32.mrb[0].mxu0
        %v768 = vadd.f32 %v667, %v767
        %v769 = vpop.f32.mrb[0].mxu0
        %v770 = vpop.f32.mrb[0].mxu0
        %v771 = vadd.f32 %v667, %v770
        %v772 = vpop.f32.mrb[0].mxu0
        %773 = vmatprep.mubr.bf16.mxu0 0
        %774 = vmatmul.mubr.bf16.gmra.mrb[0].mxu0 %v639
        %v775 = vpop.f32.mrb[0].mxu0
        %v776 = vadd.f32 %v667, %v775
        %v777 = vpop.f32.mrb[0].mxu0
        %v778 = vpop.f32.mrb[0].mxu0
        %v779 = vadd.f32 %v667, %v778
        %v780 = vpop.f32.mrb[0].mxu0
        %781 = vmatprep.mubr.bf16.mxu0 0
        %782 = vmatmul.mubr.bf16.gmra.mrb[0].mxu0 %v640
        %v783 = vpop.f32.mrb[0].mxu0
        %v784 = vadd.f32 %v667, %v783
        %v785 = vpop.f32.mrb[0].mxu0
        %v786 = vpop.f32.mrb[0].mxu0
        %v787 = vadd.f32 %v667, %v786
        %v788 = vpop.f32.mrb[0].mxu0
        %789 = vmatprep.mubr.bf16.mxu0 0
        %790 = vmatmul.mubr.bf16.gmra.mrb[0].mxu0 %v641
        %v791 = vpop.f32.mrb[0].mxu0
        %v792 = vadd.f32 %v667, %v791
        %v793 = vpop.f32.mrb[0].mxu0
        %v794 = vpop.f32.mrb[0].mxu0
        %v795 = vadd.f32 %v667, %v794
        %v796 = vpop.f32.mrb[0].mxu0
        %797 = vmatprep.mubr.bf16.mxu0 0
        %798 = vmatmul.mubr.bf16.gmra.mrb[0].mxu0 %v642
        %v799 = vpop.f32.mrb[0].mxu0
        %v800 = vadd.f32 %v667, %v799
        %v801 = vpop.f32.mrb[0].mxu0
        %v802 = vpop.f32.mrb[0].mxu0
        %v803 = vadd.f32 %v667, %v802
        %v804 = vpop.f32.mrb[0].mxu0
        %805 = vmatprep.mubr.bf16.mxu0 0
        %806 = vmatmul.mubr.bf16.gmra.mrb[0].mxu0 %v643
        %v807 = vpop.f32.mrb[0].mxu0
        %v808 = vadd.f32 %v667, %v807
        %v809 = vpop.f32.mrb[0].mxu0
        %v810 = vpop.f32.mrb[0].mxu0
        %v811 = vadd.f32 %v667, %v810
        %v812 = vpop.f32.mrb[0].mxu0
        %813 = vmatprep.mubr.bf16.mxu0 0
        %814 = vmatmul.mubr.bf16.gmra.mrb[0].mxu0 %v644
        %v815 = vpop.f32.mrb[0].mxu0
        %v816 = vadd.f32 %v667, %v815
        %v817 = vpop.f32.mrb[0].mxu0
        %v818 = vpop.f32.mrb[0].mxu0
        %v819 = vadd.f32 %v667, %v818
        %v820 = vpop.f32.mrb[0].mxu0
        %821 = vmatprep.mubr.bf16.mxu0 0
        %822 = vmatmul.mubr.bf16.gmra.mrb[0].mxu0 %v645
        %v823 = vpop.f32.mrb[0].mxu0
        %v824 = vadd.f32 %v667, %v823
        %v825 = vpop.f32.mrb[0].mxu0
        %v826 = vpop.f32.mrb[0].mxu0
        %v827 = vpop.f32.mrb[0].mxu0
        %828 = vdwg.mxu0
        %v829 = vmax.f32 %v752, 0.0
        %v830 = vmax.f32 %v755, 0.0
        %v831 = vmax.f32 %v760, 0.0
        %v832 = vmax.f32 %v763, 0.0
        %v833 = vmax.f32 %v768, 0.0
        %v834 = vmax.f32 %v771, 0.0
        %v835 = vmax.f32 %v776, 0.0
        %v836 = vmax.f32 %v779, 0.0
        %v837 = vmax.f32 %v784, 0.0
        %v838 = vmax.f32 %v787, 0.0
        %v839 = vmax.f32 %v792, 0.0
        %v840 = vmax.f32 %v795, 0.0
        %v841 = vmax.f32 %v800, 0.0
        %v842 = vmax.f32 %v803, 0.0
        %v843 = vmax.f32 %v808, 0.0
        %v844 = vmax.f32 %v811, 0.0
        %v845 = vmax.f32 %v816, 0.0
        %v846 = vmax.f32 %v819, 0.0
        %v847 = vmax.f32 %v824, 0.0
        %v848 = vpack.c.bf16 %v830, %v829
        %v849 = vpack.c.bf16 %v832, %v831
        %v850 = vpack.c.bf16 %v834, %v833
        %v851 = vpack.c.bf16 %v836, %v835
        %v852 = vpack.c.bf16 %v838, %v837
        %v853 = vpack.c.bf16 %v840, %v839
        %v854 = vpack.c.bf16 %v842, %v841
        %v855 = vpack.c.bf16 %v844, %v843
        %v856 = vpack.c.bf16 %v846, %v845
        %v857 = vpack.c.bf16 %v847, %v847
        %v858 = vld [vmem:[%s5] sm:$0xf]
        %v859 = vld [vmem:[%s5 + $0x4] sm:$0xf]
        %v860 = vld [vmem:[%s5 + $0x8] sm:$0xf]
        %v861 = vld [vmem:[%s5 + $0xc] sm:$0xf]
        %v862 = vld [vmem:[%s5 + $0x10] sm:$0xf]
        %v863 = vld [vmem:[%s5 + $0x14] sm:$0xf]
        %v864 = vld [vmem:[%s5 + $0x18] sm:$0xf]
        %v865 = vld [vmem:[%s5 + $0x1c] sm:$0xf]
        %v866 = vld [vmem:[%s5 + $0x20] sm:$0xf]
        %v867 = vld [vmem:[%s5 + $0x24] sm:$0xf]
        %v868 = vld [vmem:[%s5 + $0x28] sm:$0xf]
        %v869 = vld [vmem:[%s5 + $0x2c] sm:$0xf]
        %v870 = vld [vmem:[%s5 + $0x30] sm:$0xf]
        %v871 = vld [vmem:[%s5 + $0x34] sm:$0xf]
        %v872 = vld [vmem:[%s5 + $0x38] sm:$0xf]
        %v873 = vld [vmem:[%s5 + $0x3c] sm:$0xf]
        %v874 = vld [vmem:[%s6] sm:$0x1]
        %v876 = vlaneseq
        %v877 = vshrl.u32 %v876, 7
        %v878 = vsub.s32 0, %v877
        %v879 = vrot.slane %v874, %v878
        %v897 = vunpack.c.l.b16 %v858
        %v898 = vunpack.c.l.b16 %v859
        %v899 = vunpack.c.l.b16 %v860
        %v900 = vunpack.c.l.b16 %v861
        %v901 = vunpack.c.l.b16 %v862
        %v902 = vunpack.c.l.b16 %v863
        %v903 = vunpack.c.l.b16 %v864
        %v904 = vunpack.c.l.b16 %v865
        %v905 = vunpack.c.l.b16 %v866
        %v906 = vunpack.c.l.b16 %v867
        %v907 = vunpack.c.l.b16 %v868
        %v908 = vunpack.c.l.b16 %v869
        %v909 = vunpack.c.l.b16 %v870
        %v910 = vunpack.c.l.b16 %v871
        %v911 = vunpack.c.l.b16 %v872
        %v912 = vunpack.c.l.b16 %v873
        %v913 = vpack.c.b16 %v898, %v897
        %v914 = vpack.c.b16 %v900, %v899
        %v915 = vpack.c.b16 %v902, %v901
        %v916 = vpack.c.b16 %v904, %v903
        %v917 = vpack.c.b16 %v906, %v905
        %v918 = vpack.c.b16 %v908, %v907
        %v919 = vpack.c.b16 %v910, %v909
        %v920 = vpack.c.b16 %v912, %v911
        %929 = vmatprep.subr.bf16.mxu0 0
        %930 = vmatpush1.bf16.msra.mxu0 %v913
        %931 = vmatprep.subr.bf16.mxu0 0
        %932 = vmatpush1.bf16.msra.mxu0 %v914
        %933 = vmatprep.subr.bf16.mxu0 0
        %934 = vmatpush1.bf16.msra.mxu0 %v915
        %935 = vmatprep.subr.bf16.mxu0 0
        %936 = vmatpush1.bf16.msra.mxu0 %v916
        %937 = vmatprep.subr.bf16.mxu0 0
        %938 = vmatpush1.bf16.msra.mxu0 %v917
        %939 = vmatprep.subr.bf16.mxu0 0
        %940 = vmatpush1.bf16.msra.mxu0 %v918
        %941 = vmatprep.subr.bf16.mxu0 0
        %942 = vmatpush1.bf16.msra.mxu0 %v919
        %943 = vmatprep.subr.bf16.mxu0 0
        %944 = vmatpush1.bf16.msra.mxu0 %v920
        %945 = vmatprep.subr.bf16.mxu0 0
        %946 = vmatpush1.bf16.msra.mxu0 0
        %947 = vmatprep.subr.bf16.mxu0 0
        %948 = vmatpush1.bf16.msra.mxu0 0
        %949 = vmatprep.subr.bf16.mxu0 0
        %950 = vmatpush1.bf16.msra.mxu0 0
        %951 = vmatprep.subr.bf16.mxu0 0
        %952 = vmatpush1.bf16.msra.mxu0 0
        %953 = vmatprep.subr.bf16.mxu0 0
        %954 = vmatpush1.bf16.msra.mxu0 0
        %955 = vmatprep.subr.bf16.mxu0 0
        %956 = vmatpush1.bf16.msra.mxu0 0
        %957 = vmatprep.subr.bf16.mxu0 0
        %958 = vmatpush1.bf16.msra.mxu0 0
        %959 = vmatprep.subr.bf16.mxu0 0
        %960 = vmatpush1.bf16.msra.mxu0 0
        %961 = vmatprep.mubr.bf16.mxu0 0
        %962 = vmatmul.mubr.bf16.gmra.mrb[0].mxu0 %v848
        %v963 = vpop.f32.mrb[0].mxu0
        %v964 = vadd.f32 %v879, %v963
        %v965 = vpop.f32.mrb[0].mxu0
        %v966 = vpop.f32.mrb[0].mxu0
        %v967 = vadd.f32 %v879, %v966
        %v968 = vpop.f32.mrb[0].mxu0
        %969 = vmatprep.mubr.bf16.mxu0 0
        %970 = vmatmul.mubr.bf16.gmra.mrb[0].mxu0 %v849
        %v971 = vpop.f32.mrb[0].mxu0
        %v972 = vadd.f32 %v879, %v971
        %v973 = vpop.f32.mrb[0].mxu0
        %v974 = vpop.f32.mrb[0].mxu0
        %v975 = vadd.f32 %v879, %v974
        %v976 = vpop.f32.mrb[0].mxu0
        %977 = vmatprep.mubr.bf16.mxu0 0
        %978 = vmatmul.mubr.bf16.gmra.mrb[0].mxu0 %v850
        %v979 = vpop.f32.mrb[0].mxu0
        %v980 = vadd.f32 %v879, %v979
        %v981 = vpop.f32.mrb[0].mxu0
        %v982 = vpop.f32.mrb[0].mxu0
        %v983 = vadd.f32 %v879, %v982
        %v984 = vpop.f32.mrb[0].mxu0
        %985 = vmatprep.mubr.bf16.mxu0 0
        %986 = vmatmul.mubr.bf16.gmra.mrb[0].mxu0 %v851
        %v987 = vpop.f32.mrb[0].mxu0
        %v988 = vadd.f32 %v879, %v987
        %v989 = vpop.f32.mrb[0].mxu0
        %v990 = vpop.f32.mrb[0].mxu0
        %v991 = vadd.f32 %v879, %v990
        %v992 = vpop.f32.mrb[0].mxu0
        %993 = vmatprep.mubr.bf16.mxu0 0
        %994 = vmatmul.mubr.bf16.gmra.mrb[0].mxu0 %v852
        %v995 = vpop.f32.mrb[0].mxu0
        %v996 = vadd.f32 %v879, %v995
        %v997 = vpop.f32.mrb[0].mxu0
        %v998 = vpop.f32.mrb[0].mxu0
        %v999 = vadd.f32 %v879, %v998
        %v1000 = vpop.f32.mrb[0].mxu0
        %1001 = vmatprep.mubr.bf16.mxu0 0
        %1002 = vmatmul.mubr.bf16.gmra.mrb[0].mxu0 %v853
        %v1003 = vpop.f32.mrb[0].mxu0
        %v1004 = vadd.f32 %v879, %v1003
        %v1005 = vpop.f32.mrb[0].mxu0
        %v1006 = vpop.f32.mrb[0].mxu0
        %v1007 = vadd.f32 %v879, %v1006
        %v1008 = vpop.f32.mrb[0].mxu0
        %1009 = vmatprep.mubr.bf16.mxu0 0
        %1010 = vmatmul.mubr.bf16.gmra.mrb[0].mxu0 %v854
        %v1011 = vpop.f32.mrb[0].mxu0
        %v1012 = vadd.f32 %v879, %v1011
        %v1013 = vpop.f32.mrb[0].mxu0
        %v1014 = vpop.f32.mrb[0].mxu0
        %v1015 = vadd.f32 %v879, %v1014
        %v1016 = vpop.f32.mrb[0].mxu0
        %1017 = vmatprep.mubr.bf16.mxu0 0
        %1018 = vmatmul.mubr.bf16.gmra.mrb[0].mxu0 %v855
        %v1019 = vpop.f32.mrb[0].mxu0
        %v1020 = vadd.f32 %v879, %v1019
        %v1021 = vpop.f32.mrb[0].mxu0
        %v1022 = vpop.f32.mrb[0].mxu0
        %v1023 = vadd.f32 %v879, %v1022
        %v1024 = vpop.f32.mrb[0].mxu0
        %1025 = vmatprep.mubr.bf16.mxu0 0
        %1026 = vmatmul.mubr.bf16.gmra.mrb[0].mxu0 %v856
        %v1027 = vpop.f32.mrb[0].mxu0
        %v1028 = vadd.f32 %v879, %v1027
        %v1029 = vpop.f32.mrb[0].mxu0
        %v1030 = vpop.f32.mrb[0].mxu0
        %v1031 = vadd.f32 %v879, %v1030
        %v1032 = vpop.f32.mrb[0].mxu0
        %1033 = vmatprep.mubr.bf16.mxu0 0
        %1034 = vmatmul.mubr.bf16.gmra.mrb[0].mxu0 %v857
        %v1035 = vpop.f32.mrb[0].mxu0
        %v1036 = vadd.f32 %v879, %v1035
        %v1037 = vpop.f32.mrb[0].mxu0
        %v1038 = vpop.f32.mrb[0].mxu0
        %v1039 = vpop.f32.mrb[0].mxu0
        %1040 = vdwg.mxu0
        %v1041 = vmax.f32 %v964, 0.0
        %v1042 = vmax.f32 %v967, 0.0
        %v1043 = vmax.f32 %v972, 0.0
        %v1044 = vmax.f32 %v975, 0.0
        %v1045 = vmax.f32 %v980, 0.0
        %v1046 = vmax.f32 %v983, 0.0
        %v1047 = vmax.f32 %v988, 0.0
        %v1048 = vmax.f32 %v991, 0.0
        %v1049 = vmax.f32 %v996, 0.0
        %v1050 = vmax.f32 %v999, 0.0
        %v1051 = vmax.f32 %v1004, 0.0
        %v1052 = vmax.f32 %v1007, 0.0
        %v1053 = vmax.f32 %v1012, 0.0
        %v1054 = vmax.f32 %v1015, 0.0
        %v1055 = vmax.f32 %v1020, 0.0
        %v1056 = vmax.f32 %v1023, 0.0
        %v1057 = vmax.f32 %v1028, 0.0
        %v1058 = vmax.f32 %v1031, 0.0
        %v1059 = vmax.f32 %v1036, 0.0
        %v1060 = vpack.c.bf16 %v1042, %v1041
        %v1061 = vpack.c.bf16 %v1044, %v1043
        %v1062 = vpack.c.bf16 %v1046, %v1045
        %v1063 = vpack.c.bf16 %v1048, %v1047
        %v1064 = vpack.c.bf16 %v1050, %v1049
        %v1065 = vpack.c.bf16 %v1052, %v1051
        %v1066 = vpack.c.bf16 %v1054, %v1053
        %v1067 = vpack.c.bf16 %v1056, %v1055
        %v1068 = vpack.c.bf16 %v1058, %v1057
        %v1069 = vpack.c.bf16 %v1059, %v1059
        %v1070 = vld [vmem:[%s7] sm:$0xf]
        %v1071 = vld [vmem:[%s7 + $0x4] sm:$0xf]
        %v1072 = vld [vmem:[%s7 + $0x8] sm:$0xf]
        %v1073 = vld [vmem:[%s7 + $0xc] sm:$0xf]
        %v1074 = vld [vmem:[%s7 + $0x10] sm:$0xf]
        %v1075 = vld [vmem:[%s7 + $0x14] sm:$0xf]
        %v1076 = vld [vmem:[%s7 + $0x18] sm:$0xf]
        %v1077 = vld [vmem:[%s7 + $0x1c] sm:$0xf]
        %v1078 = vld [vmem:[%s7 + $0x20] sm:$0xf]
        %v1079 = vld [vmem:[%s7 + $0x24] sm:$0xf]
        %v1080 = vld [vmem:[%s7 + $0x28] sm:$0xf]
        %v1081 = vld [vmem:[%s7 + $0x2c] sm:$0xf]
        %v1082 = vld [vmem:[%s7 + $0x30] sm:$0xf]
        %v1083 = vld [vmem:[%s7 + $0x34] sm:$0xf]
        %v1084 = vld [vmem:[%s7 + $0x38] sm:$0xf]
        %v1085 = vld [vmem:[%s7 + $0x3c] sm:$0xf]
        %v1086 = vld [vmem:[%s8] sm:$0x1]
        %v1088 = vlaneseq
        %v1089 = vshrl.u32 %v1088, 7
        %v1090 = vsub.s32 0, %v1089
        %v1091 = vrot.slane %v1086, %v1090
        %v1109 = vunpack.c.l.b16 %v1070
        %v1110 = vunpack.c.l.b16 %v1071
        %v1111 = vunpack.c.l.b16 %v1072
        %v1112 = vunpack.c.l.b16 %v1073
        %v1113 = vunpack.c.l.b16 %v1074
        %v1114 = vunpack.c.l.b16 %v1075
        %v1115 = vunpack.c.l.b16 %v1076
        %v1116 = vunpack.c.l.b16 %v1077
        %v1117 = vunpack.c.l.b16 %v1078
        %v1118 = vunpack.c.l.b16 %v1079
        %v1119 = vunpack.c.l.b16 %v1080
        %v1120 = vunpack.c.l.b16 %v1081
        %v1121 = vunpack.c.l.b16 %v1082
        %v1122 = vunpack.c.l.b16 %v1083
        %v1123 = vunpack.c.l.b16 %v1084
        %v1124 = vunpack.c.l.b16 %v1085
        %v1125 = vpack.c.b16 %v1110, %v1109
        %v1126 = vpack.c.b16 %v1112, %v1111
        %v1127 = vpack.c.b16 %v1114, %v1113
        %v1128 = vpack.c.b16 %v1116, %v1115
        %v1129 = vpack.c.b16 %v1118, %v1117
        %v1130 = vpack.c.b16 %v1120, %v1119
        %v1131 = vpack.c.b16 %v1122, %v1121
        %v1132 = vpack.c.b16 %v1124, %v1123
        %1141 = vmatprep.subr.bf16.mxu0 0
        %1142 = vmatpush1.bf16.msra.mxu0 %v1125
        %1143 = vmatprep.subr.bf16.mxu0 0
        %1144 = vmatpush1.bf16.msra.mxu0 %v1126
        %1145 = vmatprep.subr.bf16.mxu0 0
        %1146 = vmatpush1.bf16.msra.mxu0 %v1127
        %1147 = vmatprep.subr.bf16.mxu0 0
        %1148 = vmatpush1.bf16.msra.mxu0 %v1128
        %1149 = vmatprep.subr.bf16.mxu0 0
        %1150 = vmatpush1.bf16.msra.mxu0 %v1129
        %1151 = vmatprep.subr.bf16.mxu0 0
        %1152 = vmatpush1.bf16.msra.mxu0 %v1130
        %1153 = vmatprep.subr.bf16.mxu0 0
        %1154 = vmatpush1.bf16.msra.mxu0 %v1131
        %1155 = vmatprep.subr.bf16.mxu0 0
        %1156 = vmatpush1.bf16.msra.mxu0 %v1132
        %1157 = vmatprep.subr.bf16.mxu0 0
        %1158 = vmatpush1.bf16.msra.mxu0 0
        %1159 = vmatprep.subr.bf16.mxu0 0
        %1160 = vmatpush1.bf16.msra.mxu0 0
        %1161 = vmatprep.subr.bf16.mxu0 0
        %1162 = vmatpush1.bf16.msra.mxu0 0
        %1163 = vmatprep.subr.bf16.mxu0 0
        %1164 = vmatpush1.bf16.msra.mxu0 0
        %1165 = vmatprep.subr.bf16.mxu0 0
        %1166 = vmatpush1.bf16.msra.mxu0 0
        %1167 = vmatprep.subr.bf16.mxu0 0
        %1168 = vmatpush1.bf16.msra.mxu0 0
        %1169 = vmatprep.subr.bf16.mxu0 0
        %1170 = vmatpush1.bf16.msra.mxu0 0
        %1171 = vmatprep.subr.bf16.mxu0 0
        %1172 = vmatpush1.bf16.msra.mxu0 0
        %1173 = vmatprep.mubr.bf16.mxu0 0
        %1174 = vmatmul.mubr.bf16.gmra.mrb[0].mxu0 %v1060
        %v1175 = vpop.f32.mrb[0].mxu0
        %v1176 = vadd.f32 %v1091, %v1175
        %v1177 = vpop.f32.mrb[0].mxu0
        %v1178 = vpop.f32.mrb[0].mxu0
        %v1179 = vadd.f32 %v1091, %v1178
        %v1180 = vpop.f32.mrb[0].mxu0
        %1181 = vmatprep.mubr.bf16.mxu0 0
        %1182 = vmatmul.mubr.bf16.gmra.mrb[0].mxu0 %v1061
        %v1183 = vpop.f32.mrb[0].mxu0
        %v1184 = vadd.f32 %v1091, %v1183
        %v1185 = vpop.f32.mrb[0].mxu0
        %v1186 = vpop.f32.mrb[0].mxu0
        %v1187 = vadd.f32 %v1091, %v1186
        %v1188 = vpop.f32.mrb[0].mxu0
        %1189 = vmatprep.mubr.bf16.mxu0 0
        %1190 = vmatmul.mubr.bf16.gmra.mrb[0].mxu0 %v1062
        %v1191 = vpop.f32.mrb[0].mxu0
        %v1192 = vadd.f32 %v1091, %v1191
        %v1193 = vpop.f32.mrb[0].mxu0
        %v1194 = vpop.f32.mrb[0].mxu0
        %v1195 = vadd.f32 %v1091, %v1194
        %v1196 = vpop.f32.mrb[0].mxu0
        %1197 = vmatprep.mubr.bf16.mxu0 0
        %1198 = vmatmul.mubr.bf16.gmra.mrb[0].mxu0 %v1063
        %v1199 = vpop.f32.mrb[0].mxu0
        %v1200 = vadd.f32 %v1091, %v1199
        %v1201 = vpop.f32.mrb[0].mxu0
        %v1202 = vpop.f32.mrb[0].mxu0
        %v1203 = vadd.f32 %v1091, %v1202
        %v1204 = vpop.f32.mrb[0].mxu0
        %1205 = vmatprep.mubr.bf16.mxu0 0
        %1206 = vmatmul.mubr.bf16.gmra.mrb[0].mxu0 %v1064
        %v1207 = vpop.f32.mrb[0].mxu0
        %v1208 = vadd.f32 %v1091, %v1207
        %v1209 = vpop.f32.mrb[0].mxu0
        %v1210 = vpop.f32.mrb[0].mxu0
        %v1211 = vadd.f32 %v1091, %v1210
        %v1212 = vpop.f32.mrb[0].mxu0
        %1213 = vmatprep.mubr.bf16.mxu0 0
        %1214 = vmatmul.mubr.bf16.gmra.mrb[0].mxu0 %v1065
        %v1215 = vpop.f32.mrb[0].mxu0
        %v1216 = vadd.f32 %v1091, %v1215
        %v1217 = vpop.f32.mrb[0].mxu0
        %v1218 = vpop.f32.mrb[0].mxu0
        %v1219 = vadd.f32 %v1091, %v1218
        %v1220 = vpop.f32.mrb[0].mxu0
        %1221 = vmatprep.mubr.bf16.mxu0 0
        %1222 = vmatmul.mubr.bf16.gmra.mrb[0].mxu0 %v1066
        %v1223 = vpop.f32.mrb[0].mxu0
        %v1224 = vadd.f32 %v1091, %v1223
        %v1225 = vpop.f32.mrb[0].mxu0
        %v1226 = vpop.f32.mrb[0].mxu0
        %v1227 = vadd.f32 %v1091, %v1226
        %v1228 = vpop.f32.mrb[0].mxu0
        %1229 = vmatprep.mubr.bf16.mxu0 0
        %1230 = vmatmul.mubr.bf16.gmra.mrb[0].mxu0 %v1067
        %v1231 = vpop.f32.mrb[0].mxu0
        %v1232 = vadd.f32 %v1091, %v1231
        %v1233 = vpop.f32.mrb[0].mxu0
        %v1234 = vpop.f32.mrb[0].mxu0
        %v1235 = vadd.f32 %v1091, %v1234
        %v1236 = vpop.f32.mrb[0].mxu0
        %1237 = vmatprep.mubr.bf16.mxu0 0
        %1238 = vmatmul.mubr.bf16.gmra.mrb[0].mxu0 %v1068
        %v1239 = vpop.f32.mrb[0].mxu0
        %v1240 = vadd.f32 %v1091, %v1239
        %v1241 = vpop.f32.mrb[0].mxu0
        %v1242 = vpop.f32.mrb[0].mxu0
        %v1243 = vadd.f32 %v1091, %v1242
        %v1244 = vpop.f32.mrb[0].mxu0
        %1245 = vmatprep.mubr.bf16.mxu0 0
        %1246 = vmatmul.mubr.bf16.gmra.mrb[0].mxu0 %v1069
        %v1247 = vpop.f32.mrb[0].mxu0
        %v1248 = vadd.f32 %v1091, %v1247
        %v1249 = vpop.f32.mrb[0].mxu0
        %v1250 = vpop.f32.mrb[0].mxu0
        %v1251 = vpop.f32.mrb[0].mxu0
        %1252 = vdwg.mxu0
        %1253 = vst [vmem:[%s326] sm:$0xff] %v1176
        %1254 = vst [vmem:[%s326 + $0x8] sm:$0xff] %v1179
        %1255 = vst [vmem:[%s326 + $0x10] sm:$0xff] %v1184
        %1256 = vst [vmem:[%s326 + $0x18] sm:$0xff] %v1187
        %1257 = vst [vmem:[%s326 + $0x20] sm:$0xff] %v1192
        %1258 = vst [vmem:[%s326 + $0x28] sm:$0xff] %v1195
        %1259 = vst [vmem:[%s326 + $0x30] sm:$0xff] %v1200
        %1260 = vst [vmem:[%s326 + $0x38] sm:$0xff] %v1203
        %1261 = vst [vmem:[%s326 + $0x40] sm:$0xff] %v1208
        %1262 = vst [vmem:[%s326 + $0x48] sm:$0xff] %v1211
        %1263 = vst [vmem:[%s326 + $0x50] sm:$0xff] %v1216
        %1264 = vst [vmem:[%s326 + $0x58] sm:$0xff] %v1219
        %1265 = vst [vmem:[%s326 + $0x60] sm:$0xff] %v1224
        %1266 = vst [vmem:[%s326 + $0x68] sm:$0xff] %v1227
        %1267 = vst [vmem:[%s326 + $0x70] sm:$0xff] %v1232
        %1268 = vst [vmem:[%s326 + $0x78] sm:$0xff] %v1235
        %1269 = vst [vmem:[%s326 + $0x80] sm:$0xff] %v1240
        %1270 = vst [vmem:[%s326 + $0x88] sm:$0xff] %v1243
        %1271 = vst [vmem:[%s326 + $0x90] sm:$0xff] %v1248
        %s1272 = sand.u32 %s225, 1
        %s1273 = scalar_lea.sflag [#allocation3], %s1272
        %s1274 = sand.u32 %s225, 1
        %s1275 = smul.addr %s1274, 152
        %s1276 = scalar_lea.vmem [#allocation2], %s1275
        // Predicated region
        $region57: #{tpu_custom_call.1} parent=55 // pred_check
          %p1277 = pneg %p235
        $region58: #{tpu_custom_call.1} parent=55 // pred_check_branch
          %1279 = sbr.rel (%p1277) target = $region60
        $region59: #{tpu_custom_call.1} parent=55 // pred_region
          %s1280 = smul.u32 19, %s23
          %s1282 = ssub.s32 2432, 2432
          %1283 = vsyncadd %s1273, %s1282
          %s1284 = smul.addr %s1280, 128
          %s1285 = scalar_lea.hbm %s9, %s1284
          %s1286 = sshll.u32 %s1276, 4
          %s1287 = int_to_ptr.vmem [resolvable:$true] %s1286
          %1292 = dma.vmem_to_hbm [thread:$0]  %s1287, 2432, %s1285, %s1273, 128, 128, 8
        $region60: #{tpu_custom_call.1} parent=55 // pred_fallthru
          _
      $region56: #{tpu_custom_call.1} parent=5 // pred_fallthru
        _
      %p1293 = scmp.le.s32.totalorder 2, %s18
      // Predicated region
      $region61: #{tpu_custom_call.1} parent=5 // pred_check
        %p1294 = pneg %p1293
      $region62: #{tpu_custom_call.1} parent=5 // pred_check_branch
        %1296 = sbr.rel (%p1294) target = $region64
      $region63: #{tpu_custom_call.1} parent=5 // pred_region
        %s1297 = ssub.s32 %s18, 2
        // Predicated region
        $region65: #{tpu_custom_call.1} parent=63 // pred_check
          %p1298 = pneg %p241
        $region66: #{tpu_custom_call.1} parent=63 // pred_check_branch
          %1300 = sbr.rel (%p1298) target = $region68
        $region67: #{tpu_custom_call.1} parent=63 // pred_region
          %s1301 = sand.u32 %s226, 1
          %s1302 = scalar_lea.sflag [#allocation3], %s1301
          %s1303 = sand.u32 %s226, 1
          %s1304 = smul.addr %s1303, 152
          %s1305 = scalar_lea.vmem [#allocation2], %s1304
          %1306 = dma.done %s1302, 2432
        $region68: #{tpu_custom_call.1} parent=63 // pred_fallthru
          _
      $region64: #{tpu_custom_call.1} parent=5 // pred_fallthru
        _
    $region6: #{tpu_custom_call.1} parent=1 // loop_footer
      %s22 = sadd.s32 1, %s18
    $region7: #{tpu_custom_call.1} parent=1 // loop_footer_branch
      %17 = sbr.rel target = $region3
    $region8: #{tpu_custom_call.1} parent=1 // loop_exit
      _
    %1307 = vsyncpa [#allocation3], 1
    %s1308 = scalar_lea.sflag [#allocation3], 1
    %1309 = vsyncpa %s1308, 1

</llo_original>
